<compile_context>
chip_gen: v6e
topology: v6e:2x2x1
jax: 0.10.0
libtpu: 0.0.40
codegen_flags: <defaults>
</compile_context>

<pallas_src>
import jax
import jax.numpy as jnp
from jax.experimental import pallas as pl
from jax.experimental.pallas import tpu as pltpu

_LANES = 128
_SUBLANES = 8


def _round_up(x, m):
    return ((x + m - 1) // m) * m


def _partial_sum_kernel(x_ref, acc_ref):
    """Accumulate an (tm, C) input tile into a resident (8, C) f32 block.

    acc_ref's index_map ignores the reduction (second) grid axis, so it stays
    resident in VMEM across all reduction steps (accumulator pattern).  The
    per-step work is only sublane-block folding (pure VPU vreg adds), easily
    hidden under the input DMA; the heavy cross-lane/sublane reduce is done
    once, outside the kernel, on the small (P*8, C) partials array.
    """
    @pl.when(pl.program_id(1) == 0)
    def _init():
        acc_ref[...] = jnp.zeros_like(acc_ref)

    x = x_ref[...].astype(jnp.float32)            # (tm, C), upcast in-kernel
    tm, c = x.shape
    # (tm, C) -> (tm//8, 8, C); split on an 8-sublane boundary => free view.
    acc_ref[...] += jnp.sum(x.reshape(tm // _SUBLANES, _SUBLANES, c), axis=0)


def itself_loss(x, negation=True, *, lane_width=512,
                tile_bytes=2 * 1024 * 1024, num_parallel=2):
    """Pallas implementation of Itself_loss.forward(x, negation)."""
    x = jnp.asarray(x)
    dtype = x.dtype
    itemsize = jnp.dtype(dtype).itemsize

    # Sublane packing: 8 rows/vreg for 4-byte dtypes, 16 for bf16, 32 for int8.
    align = _SUBLANES * max(1, 4 // itemsize)

    c = lane_width
    assert c % _LANES == 0, "lane_width must be a multiple of 128"

    n = x.size
    flat = x.reshape(-1)                 # keep original dtype on the HBM stream
    rows = -(-n // c)

    # Row tile: big enough to approach the HBM roofline, small enough to
    # double-buffer on every generation (~2 MiB per buffer).
    tm = max(align, (tile_bytes // (c * itemsize)) // align * align)
    tm = min(tm, _round_up(rows, align))

    p = num_parallel
    rows_padded = _round_up(rows, p * tm)
    total = rows_padded * c
    if total != n:
        # Zero-pad only the tail; zeros do not change the sum.
        flat = jnp.pad(flat, (0, total - n))
    x2d = flat.reshape(rows_padded, c)

    k_steps = rows_padded // (p * tm)

    partials = pl.pallas_call(
        _partial_sum_kernel,
        out_shape=jax.ShapeDtypeStruct((p * _SUBLANES, c), jnp.float32),
        grid_spec=pltpu.PrefetchScalarGridSpec(
            num_scalar_prefetch=0,
            grid=(p, k_steps),
            in_specs=[pl.BlockSpec((tm, c),
                                   lambda pi, ki: (pi * k_steps + ki, 0))],
            out_specs=pl.BlockSpec((_SUBLANES, c),
                                   lambda pi, ki: (pi, 0)),
        ),
        compiler_params=pltpu.CompilerParams(
            # Leading axis sharded across TensorCores (helps v7x), reduction
            # axis is sequential/resident.
            dimension_semantics=("parallel", "arbitrary"),
            vmem_limit_bytes=32 * 1024 * 1024,
        ),
    )(x2d)

    # Tiny final reduce (P*8 x C elements) + sign, done in plain JAX so the
    # kernel has no traced-constant capture and compiles once for both
    # negation settings.
    loss = jnp.sum(partials)
    if negation:
        loss = -loss
    if jnp.issubdtype(dtype, jnp.floating):
        loss = loss.astype(dtype)
    # Non-floating inputs return float32 (torch.sum would keep an int dtype).
    return loss


if __name__ == "__main__":
    key = jax.random.PRNGKey(0)
    x = jax.random.normal(key, (2, 4, 16, 16), dtype=jnp.float32)  # NCHW

    loss_neg = jax.block_until_ready(itself_loss(x, negation=True))
    loss_pos = jax.block_until_ready(itself_loss(x, negation=False))

    ref_neg = -jnp.sum(x)
    ref_pos = jnp.sum(x)
    assert jnp.allclose(loss_neg, ref_neg, atol=1e-4, rtol=1e-5), (loss_neg, ref_neg)
    assert jnp.allclose(loss_pos, ref_pos, atol=1e-4, rtol=1e-5), (loss_pos, ref_pos)

    # Awkward (non-divisible) shape exercises the zero-padding path.
    y = jax.random.normal(jax.random.PRNGKey(1), (3, 5, 7, 9), dtype=jnp.float32)
    loss_y = jax.block_until_ready(itself_loss(y, negation=True))
    assert jnp.allclose(loss_y, -jnp.sum(y), atol=1e-4, rtol=1e-5), (loss_y, -jnp.sum(y))

    print("KERNEL_OK")
</pallas_src>

<mosaic_0001>
module attributes {stable_mosaic.version = 11 : i64} {
  func.func @_partial_sum_kernel(%arg0: i32, %arg1: i32, %arg2: memref<8x512xf32, #tpu.memory_space<vmem>>, %arg3: memref<8x512xf32, #tpu.memory_space<vmem>>) attributes {dimension_semantics = [#tpu.dimension_semantics<parallel>, #tpu.dimension_semantics<arbitrary>], iteration_bounds = array<i64: 2, 1>, scalar_prefetch = 0 : i64, scratch_operands = 0 : i64, tpu.core_type = #tpu.core_type<tc>, window_params = [{transform_indices = @transform_0, window_bounds = array<i64: 8, 512>}, {transform_indices = @transform_1, window_bounds = array<i64: 8, 512>}]} {
    %c0_i32 = arith.constant 0 : i32
    %0 = arith.cmpi eq, %arg1, %c0_i32 : i32
    %1 = arith.extui %0 : i1 to i32
    %c0_i32_0 = arith.constant 0 : i32
    %2 = arith.cmpi ne, %1, %c0_i32_0 : i32
    scf.if %2 {
      %cst_6 = arith.constant 0.000000e+00 : f32
      %9 = vector.broadcast %cst_6 : f32 to vector<8x512xf32>
      %c0_7 = arith.constant 0 : index
      %c0_8 = arith.constant 0 : index
      %10 = vector.load %arg3[%c0_7, %c0_8] : memref<8x512xf32, #tpu.memory_space<vmem>>, vector<8x512xf32>
      tpu.vector_store %arg3[%c0_7, %c0_8], %9 {strides = array<i32>} : memref<8x512xf32, #tpu.memory_space<vmem>>, vector<8x512xf32>,
    } else {
    }
    %c0 = arith.constant 0 : index
    %c0_1 = arith.constant 0 : index
    %3 = vector.load %arg2[%c0, %c0_1] : memref<8x512xf32, #tpu.memory_space<vmem>>, vector<8x512xf32>
    %c0_2 = arith.constant 0 : index
    %c0_3 = arith.constant 0 : index
    %4 = vector.load %arg3[%c0_2, %c0_3] : memref<8x512xf32, #tpu.memory_space<vmem>>, vector<8x512xf32>
    %5 = vector.shape_cast %3 : vector<8x512xf32> to vector<1x8x512xf32>
    %cst = arith.constant dense<0.000000e+00> : vector<8x512xf32>
    %6 = vector.multi_reduction <add>, %5, %cst [0] : vector<1x8x512xf32> to vector<8x512xf32>
    %7 = arith.addf %4, %6 : vector<8x512xf32>
    %c0_4 = arith.constant 0 : index
    %c0_5 = arith.constant 0 : index
    %8 = vector.load %arg3[%c0_4, %c0_5] : memref<8x512xf32, #tpu.memory_space<vmem>>, vector<8x512xf32>
    tpu.vector_store %arg3[%c0_4, %c0_5], %7 {strides = array<i32>} : memref<8x512xf32, #tpu.memory_space<vmem>>, vector<8x512xf32>,
    return
  }
  func.func @transform_0(%arg0: i32, %arg1: i32) -> (i32, i32) {
    %c1_i32 = arith.constant 1 : i32
    %0 = arith.muli %arg0, %c1_i32 : i32
    %1 = arith.addi %0, %arg1 : i32
    %c0_i32 = arith.constant 0 : i32
    %c0_i32_0 = arith.constant 0 : i32
    return %1, %c0_i32 : i32, i32
  }
  func.func @transform_1(%arg0: i32, %arg1: i32) -> (i32, i32) {
    %c0_i32 = arith.constant 0 : i32
    %c0_i32_0 = arith.constant 0 : i32
    return %arg0, %c0_i32 : i32, i32
  }
}

</mosaic_0001>

<llo_original>
// kernel: tpu_custom_call.1
$region0: #{tpu_custom_call.1}
  #allocation0 [shape = 'u32[]', space=smem, size = 0x4, offset = 0x4, fixed_abs, tag = 'smem constant byte address 0x4 - core index']
  #allocation1 [shape = 'u32[144,128]{1,0:T(1,128)}', space=vmem, size = 0x12000, scoped, tag = 'internal scratch']
  %s0 = inlined_call_operand.hbm [shape: f32[16,512], index: 0, kind: input, shape index: {}]
  %s1 = inlined_call_operand.hbm [shape: f32[16,512], index: 1, kind: output, shape index: {}]
  %s2 = sld [smem:[#allocation0]]
  $region45: #{tpu_custom_call.1} parent=0
    _
  %s4 = ssub.s32 1, %s2
  %s5 = scalar_select 0, %s4, %s2
  $region1: #{tpu_custom_call.1} parent=0
    #allocation2 [shape = 'u8[32768]{0}', space=vmem, size = 0x8000, scoped, tag = 'input window, operand 0']
    #allocation3 [shape = 's32[2]{0}', space=sflag, size = 0x8, scoped, tag = 'scoped memory for tpu_custom_call.1']
    #allocation4 [shape = 's32[2]{0}', space=sflag, size = 0x8, scoped, tag = 'scoped memory for tpu_custom_call.1']
    #allocation5 [shape = 'u8[32768]{0}', space=vmem, size = 0x8000, scoped, tag = 'output window, operand 0']
    %6 = vsyncpa [#allocation3], 0
    %s7 = scalar_lea.sflag [#allocation3], 1
    %8 = vsyncpa %s7, 0
    %9 = vsyncpa [#allocation4], 0
    %s10 = scalar_lea.sflag [#allocation4], 1
    %11 = vsyncpa %s10, 0
    loop: start=0, step=1, limit=4
    $region2: #{tpu_custom_call.1} parent=1 // loop_pre_header
      _
    $region3: #{tpu_custom_call.1} parent=1 // loop_header
      %s13 = sphi 0, %s17
      %p14 = scmp.ge.s32.totalorder %s13, 4
      %s20 = sphi 0, %s32
      %s21 = sphi 0, %s28
      %s22 = sphi 0, %s20
      %s23 = sphi 0, %s21
      %s24 = sphi 0, %s22
      %s25 = sphi 0, %s23
      %s37 = sphi 0, %s39
      %s40 = sphi 0, %s37
      %s41 = sphi 0, %s40
      %s57 = sphi 0, %s41
      %s63 = sphi 0, %s65
      %s66 = sphi 0, %s63
      %s67 = sphi 0, %s66
      %s83 = sphi 0, %s67
    $region4: #{tpu_custom_call.1} parent=1 // loop_header_branch
      %16 = sbr.rel (%p14) target = $region8
    $region5: #{tpu_custom_call.1} parent=1 // loop_body
      %s18 = ssub.s32 %s13, 1
      %s19 = ssub.s32 %s13, 2
      %s26 = sadd.s32 1, %s21
      %p27 = scmp.ge.s32.totalorder %s26, 1
      %s28 = scalar_select %p27, 0, %s26
      %s29 = sadd.s32 1, %s20
      %s30 = scalar_select %p27, %s29, %s20
      %p31 = scmp.ge.s32.totalorder %s30, 2
      %s32 = scalar_select %p31, 0, %s30
      %s33 = sadd.s32 %s20, %s21
      %s34 = sadd.s32 %s32, %s28
      %s35 = ssub.s32 %s33, %s34
      %p36 = scmp.eq.s32.totalorder %s35, 0
      %s38 = sadd.s32 %s37, 1
      %s39 = scalar_select %p36, %s37, %s38
      %p42 = pneg %p36
      %p43 = scmp.eq.s32.totalorder %s13, 1
      %p44 = por %p42, %p43
      %p45 = scmp.ne.s32.totalorder %s37, %s40
      %p46 = scmp.eq.s32.totalorder %s13, 0
      %p47 = por %p45, %p46
      %p48 = scmp.ne.s32.totalorder %s37, %s40
      %p49 = scmp.eq.s32.totalorder %s18, 1
      %p50 = por %p48, %p49
      %p51 = scmp.ne.s32.totalorder %s40, %s41
      %p52 = scmp.eq.s32.totalorder %s18, 0
      %p53 = por %p51, %p52
      %p54 = scmp.ne.s32.totalorder %s40, %s41
      %p55 = scmp.eq.s32.totalorder %s19, 1
      %p56 = por %p54, %p55
      %p58 = scmp.ne.s32.totalorder %s41, %s57
      %p59 = scmp.eq.s32.totalorder %s19, 0
      %p60 = por %p58, %p59
      %s61 = ssub.s32 %s20, %s32
      %p62 = scmp.eq.s32.totalorder %s61, 0
      %s64 = sadd.s32 %s63, 1
      %s65 = scalar_select %p62, %s63, %s64
      %p68 = pneg %p62
      %p69 = scmp.eq.s32.totalorder %s13, 1
      %p70 = por %p68, %p69
      %p71 = scmp.ne.s32.totalorder %s63, %s66
      %p72 = scmp.eq.s32.totalorder %s13, 0
      %p73 = por %p71, %p72
      %p74 = scmp.ne.s32.totalorder %s63, %s66
      %p75 = scmp.eq.s32.totalorder %s18, 1
      %p76 = por %p74, %p75
      %p77 = scmp.ne.s32.totalorder %s66, %s67
      %p78 = scmp.eq.s32.totalorder %s18, 0
      %p79 = por %p77, %p78
      %p80 = scmp.ne.s32.totalorder %s66, %s67
      %p81 = scmp.eq.s32.totalorder %s19, 1
      %p82 = por %p80, %p81
      %p84 = scmp.ne.s32.totalorder %s67, %s83
      %p85 = scmp.eq.s32.totalorder %s19, 0
      %p86 = por %p84, %p85
      %p87 = scmp.le.s32.totalorder 1, %s13
      %p88 = scmp.lt.s32.totalorder %s13, 3
      %p89 = pnand %p87, %p88
      %p90 = pneg %p89
      // Predicated region
      $region9: #{tpu_custom_call.1} parent=5 // pred_check
        _
      $region10: #{tpu_custom_call.1} parent=5 // pred_check_branch
        %92 = sbr.rel (%p89) target = $region12
      $region11: #{tpu_custom_call.1} parent=5 // pred_region
        %s93 = ssub.s32 %s13, 1
      $region12: #{tpu_custom_call.1} parent=5 // pred_fallthru
        _
      %p94 = scmp.lt.s32.totalorder %s13, 2
      // Predicated region
      $region13: #{tpu_custom_call.1} parent=5 // pred_check
        %p95 = pneg %p94
      $region14: #{tpu_custom_call.1} parent=5 // pred_check_branch
        %97 = sbr.rel (%p95) target = $region16
      $region15: #{tpu_custom_call.1} parent=5 // pred_region
        // Predicated region
        $region17: #{tpu_custom_call.1} parent=15 // pred_check
          %p98 = pneg %p47
        $region18: #{tpu_custom_call.1} parent=15 // pred_check_branch
          %100 = sbr.rel (%p98) target = $region20
        $region19: #{tpu_custom_call.1} parent=15 // pred_region
          %s101 = sand.u32 %s37, 1
          %s102 = scalar_lea.sflag [#allocation3], %s101
          %s103 = sand.u32 %s37, 1
          %s104 = smul.addr %s103, 32
          %s105 = scalar_lea.vmem [#allocation2], %s104
          %s106 = sadd.s32 %s20, %s21
          %s108 = ssub.s32 512, 512
          %109 = vsyncadd %s102, %s108
          %s110 = smul.addr %s106, 4
          %s111 = smul.addr %s110, 128
          %s112 = scalar_lea.hbm %s0, %s111
          %s114 = sshll.u32 %s105, 4
          %s115 = int_to_ptr.vmem [resolvable:$true] %s114
          %117 = dma.hbm_to_vmem [thread:$0]  %s112, 512, %s115, %s102
        $region20: #{tpu_custom_call.1} parent=15 // pred_fallthru
          _
      $region16: #{tpu_custom_call.1} parent=5 // pred_fallthru
        _
      %p118 = scmp.le.s32.totalorder 1, %s13
      %p119 = scmp.lt.s32.totalorder %s13, 3
      %p120 = pnand %p118, %p119
      %p121 = pneg %p120
      // Predicated region
      $region21: #{tpu_custom_call.1} parent=5 // pred_check
        _
      $region22: #{tpu_custom_call.1} parent=5 // pred_check_branch
        %123 = sbr.rel (%p120) target = $region24
      $region23: #{tpu_custom_call.1} parent=5 // pred_region
        %s124 = ssub.s32 %s13, 1
        %s125 = sand.u32 %s40, 1
        %s126 = scalar_lea.sflag [#allocation3], %s125
        %s127 = sand.u32 %s40, 1
        %s128 = smul.addr %s127, 32
        %s129 = scalar_lea.vmem [#allocation2], %s128
        // Predicated region
        $region25: #{tpu_custom_call.1} parent=23 // pred_check
          %p130 = pneg %p53
        $region26: #{tpu_custom_call.1} parent=23 // pred_check_branch
          %132 = sbr.rel (%p130) target = $region28
        $region27: #{tpu_custom_call.1} parent=23 // pred_region
          %133 = dma.done %s126, 512
        $region28: #{tpu_custom_call.1} parent=23 // pred_fallthru
          _
        %s134 = sand.u32 %s40, 1
        %s135 = scalar_lea.sflag [#allocation3], %s134
        %s136 = sand.u32 %s40, 1
        %s137 = smul.addr %s136, 32
        %s138 = scalar_lea.vmem [#allocation2], %s137
        %p139 = pneg %p53
        %p140 = pneg %p50
        %p141 = pneg %p79
        %p142 = pneg %p76
        %s143 = sand.u32 %s66, 1
        %s144 = scalar_lea.sflag [#allocation4], %s143
        %s145 = sand.u32 %s66, 1
        %s146 = smul.addr %s145, 32
        %s147 = scalar_lea.vmem [#allocation5], %s146
        %s148 = sadd.s32 %s22, %s23
        %p149 = scmp.eq.s32.totalorder %s23, 0
        // Predicated region
        $region29: #{tpu_custom_call.1} parent=23 // pred_check
          %p150 = pneg %p149
        $region30: #{tpu_custom_call.1} parent=23 // pred_check_branch
          %152 = sbr.rel (%p150) target = $region32
        $region31: #{tpu_custom_call.1} parent=23 // pred_region
          %153 = vst [vmem:[%s147] sm:$0xff] 0.0
          %154 = vst [vmem:[%s147 + $0x8] sm:$0xff] 0.0
          %155 = vst [vmem:[%s147 + $0x10] sm:$0xff] 0.0
          %156 = vst [vmem:[%s147 + $0x18] sm:$0xff] 0.0
        $region32: #{tpu_custom_call.1} parent=23 // pred_fallthru
          _
        %v157 = vld [vmem:[%s129] sm:$0xff]
        %v158 = vld [vmem:[%s129 + $0x8] sm:$0xff]
        %v159 = vld [vmem:[%s129 + $0x10] sm:$0xff]
        %v160 = vld [vmem:[%s129 + $0x18] sm:$0xff]
        %v161 = vld [vmem:[%s147] sm:$0xff]
        %v162 = vld [vmem:[%s147 + $0x8] sm:$0xff]
        %v163 = vld [vmem:[%s147 + $0x10] sm:$0xff]
        %v164 = vld [vmem:[%s147 + $0x18] sm:$0xff]
        %v165 = vadd.f32 %v157, 0.0
        %v166 = vadd.f32 %v158, 0.0
        %v167 = vadd.f32 %v159, 0.0
        %v168 = vadd.f32 %v160, 0.0
        %v169 = vadd.f32 %v161, %v165
        %v170 = vadd.f32 %v162, %v166
        %v171 = vadd.f32 %v163, %v167
        %v172 = vadd.f32 %v164, %v168
        %173 = vst [vmem:[%s147] sm:$0xff] %v169
        %174 = vst [vmem:[%s147 + $0x8] sm:$0xff] %v170
        %175 = vst [vmem:[%s147 + $0x10] sm:$0xff] %v171
        %176 = vst [vmem:[%s147 + $0x18] sm:$0xff] %v172
        %s177 = sand.u32 %s66, 1
        %s178 = scalar_lea.sflag [#allocation4], %s177
        %s179 = sand.u32 %s66, 1
        %s180 = smul.addr %s179, 32
        %s181 = scalar_lea.vmem [#allocation5], %s180
        // Predicated region
        $region33: #{tpu_custom_call.1} parent=23 // pred_check
          %p182 = pneg %p76
        $region34: #{tpu_custom_call.1} parent=23 // pred_check_branch
          %184 = sbr.rel (%p182) target = $region36
        $region35: #{tpu_custom_call.1} parent=23 // pred_region
          %s186 = ssub.s32 512, 512
          %187 = vsyncadd %s178, %s186
          %s188 = smul.addr %s22, 4
          %s189 = smul.addr %s188, 128
          %s190 = scalar_lea.hbm %s1, %s189
          %s192 = sshll.u32 %s181, 4
          %s193 = int_to_ptr.vmem [resolvable:$true] %s192
          %195 = dma.vmem_to_hbm [thread:$0]  %s193, 512, %s190, %s178
        $region36: #{tpu_custom_call.1} parent=23 // pred_fallthru
          _
      $region24: #{tpu_custom_call.1} parent=5 // pred_fallthru
        _
      %p196 = scmp.le.s32.totalorder 2, %s13
      // Predicated region
      $region37: #{tpu_custom_call.1} parent=5 // pred_check
        %p197 = pneg %p196
      $region38: #{tpu_custom_call.1} parent=5 // pred_check_branch
        %199 = sbr.rel (%p197) target = $region40
      $region39: #{tpu_custom_call.1} parent=5 // pred_region
        %s200 = ssub.s32 %s13, 2
        // Predicated region
        $region41: #{tpu_custom_call.1} parent=39 // pred_check
          %p201 = pneg %p82
        $region42: #{tpu_custom_call.1} parent=39 // pred_check_branch
          %203 = sbr.rel (%p201) target = $region44
        $region43: #{tpu_custom_call.1} parent=39 // pred_region
          %s204 = sand.u32 %s67, 1
          %s205 = scalar_lea.sflag [#allocation4], %s204
          %s206 = sand.u32 %s67, 1
          %s207 = smul.addr %s206, 32
          %s208 = scalar_lea.vmem [#allocation5], %s207
          %209 = dma.done %s205, 512
        $region44: #{tpu_custom_call.1} parent=39 // pred_fallthru
          _
      $region40: #{tpu_custom_call.1} parent=5 // pred_fallthru
        _
    $region6: #{tpu_custom_call.1} parent=1 // loop_footer
      %s17 = sadd.s32 1, %s13
    $region7: #{tpu_custom_call.1} parent=1 // loop_footer_branch
      %12 = sbr.rel target = $region3
    $region8: #{tpu_custom_call.1} parent=1 // loop_exit
      _
    %210 = vsyncpa [#allocation3], 1
    %s211 = scalar_lea.sflag [#allocation3], 1
    %212 = vsyncpa %s211, 1
    %213 = vsyncpa [#allocation4], 1
    %s214 = scalar_lea.sflag [#allocation4], 1
    %215 = vsyncpa %s214, 1

</llo_original>
